<compile_context>
chip_gen: v6e
topology: v6e:2x2x1
jax: 0.10.0
libtpu: 0.0.40
codegen_flags: <defaults>
</compile_context>

<pallas_src>
import math
from functools import partial

import jax
import jax.numpy as jnp
from jax import lax
from jax.experimental import pallas as pl
from jax.experimental.pallas import tpu as pltpu

EPS = 1e-5        # RevIN eps
_LANE = 128       # TPU lane width
_SUBLANE = 8      # TPU sublane width
_VMEM_BUDGET = 40 * 1024 * 1024   # per-step budget, safe on v7x (64 MiB physical)


def _round_up(n, m):
    return ((n + m - 1) // m) * m


def _shared_lane_block(n, l, p, max_blk=2048, vmem_budget=_VMEM_BUDGET):
    """Pick the lane block FIRST (VMEM-budgeted, multiple of 128), then pad the fused
    lane axis N up to a multiple of it.  Guarantees large blocks for large N instead of
    degrading to 128 when N is awkward."""
    n128 = _round_up(max(n, 1), _LANE)
    blk = min(max_blk, n128)

    def tile_bytes(b):
        # double-buffered x/out/params blocks + resident W & bias + ~2 f32 full-tile temps
        return 4 * (2 * (l + p + 3) * b + p * (l + 1) + 2 * (l + p) * b)

    while blk > _LANE and tile_bytes(blk) > vmem_budget:
        blk -= _LANE

    # v7x megacore: prefer >= 2 parallel grid steps when the problem allows it.
    if blk > _LANE and _round_up(n, blk) // blk < 2:
        blk = _round_up(blk // 2, _LANE)

    n_pad = _round_up(n, blk)
    return n_pad, blk, tile_bytes(blk)


def _separate_batch_block(b, l, p, max_blk=1024, vmem_budget=_VMEM_BUDGET):
    """Batch block for the separate path (batch on the sublane axis -> multiple of 8)."""
    b8 = _round_up(max(b, 1), _SUBLANE)
    blk = min(max_blk, b8)
    blk = _round_up(blk, _SUBLANE)

    def tile_bytes(bb):
        return 4 * (2 * (l + p) * bb + 2 * l * p + p + 2 * (l + p) * bb)

    while blk > _SUBLANE and tile_bytes(blk) > vmem_budget:
        blk -= _SUBLANE

    b_pad = _round_up(b, blk)
    return b_pad, blk, tile_bytes(blk)


def _vmem_limit(tile_bytes):
    # Explicit scoped-VMEM limit: above the 16/32 MiB defaults, below v7x's 64 MiB.
    return int(min(64 * 1024 * 1024, max(32 * 1024 * 1024, (tile_bytes * 3) // 2)))


# ----------------------------- Pallas kernels ------------------------------ #

def _rlinear_shared_kernel(x_ref, w_ref, b_ref, params_ref, o_ref):
    # x_ref:      (L, Nblk)  fused lane axis n = b*V + v
    # w_ref:      (P, L)     shared Linear weight (resident across the grid)
    # b_ref:      (P, 1)     shared Linear bias
    # params_ref: (3, Nblk)  rows = [gamma, beta, 1/(gamma+eps^2)] per fused column
    # o_ref:      (P, Nblk)
    x = x_ref[...]
    inv_l = 1.0 / x.shape[0]

    # Centered per-column mean / variance (unbiased=False).
    mean = jnp.sum(x, axis=0, keepdims=True) * inv_l                      # (1, Nblk)
    xc = x - mean
    var = jnp.sum(xc * xc, axis=0, keepdims=True) * inv_l
    rstd = lax.rsqrt(var + EPS)                                           # EUP
    stdev = (var + EPS) * rstd                                            # == sqrt(var+EPS)

    p = params_ref[...]                                                   # (3, Nblk)
    gamma = p[0:1, :]
    beta = p[1:2, :]
    rgamma = p[2:3, :]

    xn = xc * (rstd * gamma) + beta                                       # (L, Nblk)

    # Shared Linear over time, batch*variates on the lane/N axis (MXU, f32 accumulate).
    pred = jnp.dot(w_ref[...], xn, preferred_element_type=jnp.float32)    # (P, Nblk)
    pred = pred + b_ref[...]                                              # (P,1) bcast

    # Denorm with precomputed reciprocal of (gamma + eps^2).
    pred = (pred - beta) * (rgamma * stdev) + mean
    o_ref[...] = pred.astype(o_ref.dtype)


def _rlinear_separate_kernel(params_ref, x_ref, w_ref, b_ref, o_ref):
    # params_ref: (3, V) SMEM table -- rows = [gamma, beta, 1/(gamma+eps^2)]
    # x_ref:      (1, Bblk, L)  one variate; batch on sublanes, time on lanes
    # w_ref:      (1, L, P)     this variate's weight, pre-transposed in the wrapper
    # b_ref:      (1, 1, P)     this variate's bias
    # o_ref:      (1, Bblk, P)  pred_len lane-dense
    v = pl.program_id(0)
    gamma = params_ref[0, v]
    beta = params_ref[1, v]
    rgamma = params_ref[2, v]

    x = x_ref[0]                                                          # (Bblk, L)
    inv_l = 1.0 / x.shape[1]

    mean = jnp.sum(x, axis=1, keepdims=True) * inv_l                      # (Bblk, 1)
    xc = x - mean
    var = jnp.sum(xc * xc, axis=1, keepdims=True) * inv_l
    rstd = lax.rsqrt(var + EPS)
    stdev = (var + EPS) * rstd

    xn = xc * (rstd * gamma) + beta                                       # (Bblk, L)

    # Per-variate Linear on the MXU; pred_len on the lane axis.
    pred = jnp.dot(xn, w_ref[0], preferred_element_type=jnp.float32)      # (Bblk, P)
    pred = pred + b_ref[0]                                                # (1, P) bcast

    pred = (pred - beta) * (rgamma * stdev) + mean
    o_ref[0] = pred.astype(o_ref.dtype)


# ------------------------------- wrappers ----------------------------------- #

def _shared_forward(x, w, b, gamma, beta):
    B, L, V = x.shape
    P = w.shape[0]
    N = B * V
    Np, nblk, tile_bytes = _shared_lane_block(N, L, P)

    # (B, L, V) -> (L, B*V): lane column n = b*V + v, padded to a multiple of nblk.
    # TODO(synk): for V >= 128 this transpose round-trip could be removed by tiling the
    #             native (B, L, V) layout directly from BlockSpec index_maps.
    x2 = jnp.transpose(x, (1, 0, 2)).reshape(L, N)
    if Np != N:
        x2 = jnp.pad(x2, ((0, 0), (0, Np - N)))

    g = jnp.tile(gamma.reshape(1, V), (1, B))
    be = jnp.tile(beta.reshape(1, V), (1, B))
    if Np != N:
        g = jnp.pad(g, ((0, 0), (0, Np - N)), constant_values=1.0)  # keeps rg finite
        be = jnp.pad(be, ((0, 0), (0, Np - N)))
    rg = 1.0 / (g + EPS * EPS)                    # precomputed denorm reciprocal
    params = jnp.concatenate([g, be, rg], axis=0)  # (3, Np): one DMA per grid step

    b2 = b.reshape(P, 1)

    out2 = pl.pallas_call(
        _rlinear_shared_kernel,
        out_shape=jax.ShapeDtypeStruct((P, Np), x.dtype),
        grid_spec=pltpu.PrefetchScalarGridSpec(
            num_scalar_prefetch=0,
            grid=(Np // nblk,),
            in_specs=[
                pl.BlockSpec((L, nblk), lambda j: (0, j)),
                pl.BlockSpec((P, L), lambda j: (0, 0)),
                pl.BlockSpec((P, 1), lambda j: (0, 0)),
                pl.BlockSpec((3, nblk), lambda j: (0, j)),
            ],
            out_specs=pl.BlockSpec((P, nblk), lambda j: (0, j)),
        ),
        compiler_params=pltpu.CompilerParams(
            dimension_semantics=("parallel",),
            vmem_limit_bytes=_vmem_limit(tile_bytes)),
    )(x2, w, b2, params)

    # (P, B*V) -> (B, P, V)
    return jnp.transpose(out2[:, :N].reshape(P, B, V), (1, 0, 2))


def _separate_forward(x, w, b, gamma, beta):
    B, L, V = x.shape
    P = w.shape[1]
    Bp, bblk, tile_bytes = _separate_batch_block(B, L, P)

    # (B, L, V) -> (V, B, L): one variate per leading index; batch only pads to a
    # multiple of 8 (sublanes), and pred_len lands lane-dense on the output.
    x3 = jnp.transpose(x, (2, 0, 1))
    if Bp != B:
        x3 = jnp.pad(x3, ((0, 0), (0, Bp - B), (0, 0)))

    w_t = jnp.transpose(w, (0, 2, 1))             # (V, L, P) -- tiny, resident weights
    b3 = b.reshape(V, 1, P)

    g = gamma.reshape(V)
    be = beta.reshape(V)
    rg = 1.0 / (g + EPS * EPS)
    params = jnp.stack([g, be, rg], axis=0)       # (3, V) -> SMEM scalar table

    out3 = pl.pallas_call(
        _rlinear_separate_kernel,
        out_shape=jax.ShapeDtypeStruct((V, Bp, P), x.dtype),
        grid_spec=pltpu.PrefetchScalarGridSpec(
            num_scalar_prefetch=0,
            grid=(V, Bp // bblk),
            in_specs=[
                pl.BlockSpec(memory_space=pltpu.MemorySpace.SMEM),
                pl.BlockSpec((1, bblk, L), lambda v, j: (v, j, 0)),
                pl.BlockSpec((1, L, P), lambda v, j: (v, 0, 0)),
                pl.BlockSpec((1, 1, P), lambda v, j: (v, 0, 0)),
            ],
            out_specs=pl.BlockSpec((1, bblk, P), lambda v, j: (v, j, 0)),
        ),
        compiler_params=pltpu.CompilerParams(
            dimension_semantics=("parallel", "parallel"),
            vmem_limit_bytes=_vmem_limit(tile_bytes)),
    )(params, x3, w_t, b3)

    # (V, B, P) -> (B, P, V)
    return jnp.transpose(out3[:, :B, :], (1, 2, 0))


@partial(jax.jit, static_argnames=("separate",))
def rlinear_forward(x, w, b, gamma, beta, *, separate):
    """x: (B, L, V) float32. Returns (B, pred_len, V)."""
    B, L, V = x.shape
    if separate:
        assert w.shape[0] == V and w.shape[2] == L and b.shape == (V, w.shape[1])
        return _separate_forward(x, w, b, gamma, beta)
    else:
        assert w.shape[1] == L
        return _shared_forward(x, w, b.reshape(-1), gamma, beta)


# ----------------------------- pure-JAX reference --------------------------- #

def rlinear_ref(x, w, b, gamma, beta, *, separate):
    mean = jnp.mean(x, axis=1, keepdims=True)
    stdev = jnp.sqrt(jnp.var(x, axis=1, keepdims=True) + EPS)
    g = gamma.reshape(1, 1, -1)
    be = beta.reshape(1, 1, -1)
    xn = (x - mean) / stdev * g + be
    if separate:
        pred = jnp.einsum('blv,vpl->bpv', xn, w) + b.T[None]          # (B, P, V)
    else:
        pred = jnp.einsum('blv,pl->bpv', xn, w) + b.reshape(1, -1, 1)
    pred = (pred - be) / (g + EPS * EPS) * stdev + mean
    return pred


# ---------------------------------- main ------------------------------------ #

if __name__ == "__main__":
    B, L, P, V = 2, 32, 16, 4   # batch, seq_len, pred_len, num_variates

    key = jax.random.PRNGKey(0)
    k_x, k_ws, k_bs, k_w, k_b = jax.random.split(key, 5)

    x = jax.random.normal(k_x, (B, L, V), dtype=jnp.float32)

    # nn.Linear default init: U(-1/sqrt(in_features), 1/sqrt(in_features))
    bound = 1.0 / math.sqrt(L)
    w_sep = jax.random.uniform(k_ws, (V, P, L), minval=-bound, maxval=bound,
                               dtype=jnp.float32)
    b_sep = jax.random.uniform(k_bs, (V, P), minval=-bound, maxval=bound,
                               dtype=jnp.float32)
    w_shared = jax.random.uniform(k_w, (P, L), minval=-bound, maxval=bound,
                                  dtype=jnp.float32)
    b_shared = jax.random.uniform(k_b, (1, P), minval=-bound, maxval=bound,
                                  dtype=jnp.float32)

    # RevIN affine parameters (init: ones / zeros)
    gamma = jnp.ones((1, V), dtype=jnp.float32)
    beta = jnp.zeros((1, V), dtype=jnp.float32)

    # separate=True path (one Linear per variate)
    out_sep = rlinear_forward(x, w_sep, b_sep, gamma, beta, separate=True)
    out_sep = jax.block_until_ready(out_sep)
    ref_sep = rlinear_ref(x, w_sep, b_sep, gamma, beta, separate=True)
    assert out_sep.shape == (B, P, V)
    assert jnp.allclose(out_sep, ref_sep, rtol=1e-4, atol=1e-4), "separate mismatch"

    # separate=False path (single shared Linear over the time axis)
    out_shr = rlinear_forward(x, w_shared, b_shared, gamma, beta, separate=False)
    out_shr = jax.block_until_ready(out_shr)
    ref_shr = rlinear_ref(x, w_shared, b_shared, gamma, beta, separate=False)
    assert out_shr.shape == (B, P, V)
    assert jnp.allclose(out_shr, ref_shr, rtol=1e-4, atol=1e-4), "shared mismatch"

    print("KERNEL_OK")
</pallas_src>

<mosaic_0001>
module attributes {stable_mosaic.version = 11 : i64} {
  func.func @_rlinear_separate_kernel(%arg0: i32, %arg1: i32, %arg2: memref<3x4xf32, #tpu.memory_space<smem>>, %arg3: memref<1x8x32xf32, #tpu.memory_space<vmem>>, %arg4: memref<1x32x16xf32, #tpu.memory_space<vmem>>, %arg5: memref<1x1x16xf32, #tpu.memory_space<vmem>>, %arg6: memref<1x8x16xf32, #tpu.memory_space<vmem>>) attributes {dimension_semantics = [#tpu.dimension_semantics<parallel>, #tpu.dimension_semantics<parallel>], iteration_bounds = array<i64: 4, 1>, scalar_prefetch = 0 : i64, scratch_operands = 0 : i64, tpu.core_type = #tpu.core_type<tc>, window_params = [{transform_indices = @transform_0, window_bounds = array<i64: 3, 4>}, {transform_indices = @transform_1, window_bounds = array<i64: 1, 8, 32>}, {transform_indices = @transform_2, window_bounds = array<i64: 1, 32, 16>}, {transform_indices = @transform_3, window_bounds = array<i64: 1, 1, 16>}, {transform_indices = @transform_4, window_bounds = array<i64: 1, 8, 16>}]} {
    %c0 = arith.constant 0 : index
    %0 = arith.index_cast %arg0 : i32 to index
    %1 = memref.load %arg2[%c0, %0] : memref<3x4xf32, #tpu.memory_space<smem>>
    %c1 = arith.constant 1 : index
    %2 = arith.index_cast %arg0 : i32 to index
    %3 = memref.load %arg2[%c1, %2] : memref<3x4xf32, #tpu.memory_space<smem>>
    %c2 = arith.constant 2 : index
    %4 = arith.index_cast %arg0 : i32 to index
    %5 = memref.load %arg2[%c2, %4] : memref<3x4xf32, #tpu.memory_space<smem>>
    %c0_0 = arith.constant 0 : index
    %c0_1 = arith.constant 0 : index
    %c0_2 = arith.constant 0 : index
    %6 = vector.load %arg3[%c0_0, %c0_1, %c0_2] : memref<1x8x32xf32, #tpu.memory_space<vmem>>, vector<1x8x32xf32>
    %7 = vector.shape_cast %6 : vector<1x8x32xf32> to vector<8x32xf32>
    %cst = arith.constant dense<0.000000e+00> : vector<8xf32>
    %8 = vector.multi_reduction <add>, %7, %cst [1] : vector<8x32xf32> to vector<8xf32>
    %9 = vector.shape_cast %8 : vector<8xf32> to vector<8x1xf32>
    %cst_3 = arith.constant 3.125000e-02 : f32
    %10 = vector.broadcast %cst_3 : f32 to vector<8x1xf32>
    %11 = arith.mulf %9, %10 : vector<8x1xf32>
    %12 = vector.broadcast %11 : vector<8x1xf32> to vector<8x32xf32>
    %13 = arith.subf %7, %12 : vector<8x32xf32>
    %14 = arith.mulf %13, %13 : vector<8x32xf32>
    %cst_4 = arith.constant dense<0.000000e+00> : vector<8xf32>
    %15 = vector.multi_reduction <add>, %14, %cst_4 [1] : vector<8x32xf32> to vector<8xf32>
    %16 = vector.shape_cast %15 : vector<8xf32> to vector<8x1xf32>
    %cst_5 = arith.constant 3.125000e-02 : f32
    %17 = vector.broadcast %cst_5 : f32 to vector<8x1xf32>
    %18 = arith.mulf %16, %17 : vector<8x1xf32>
    %cst_6 = arith.constant 9.99999974E-6 : f32
    %19 = vector.broadcast %cst_6 : f32 to vector<8x1xf32>
    %20 = arith.addf %18, %19 : vector<8x1xf32>
    %21 = math.rsqrt %20 : vector<8x1xf32>
    %cst_7 = arith.constant 9.99999974E-6 : f32
    %22 = vector.broadcast %cst_7 : f32 to vector<8x1xf32>
    %23 = arith.addf %18, %22 : vector<8x1xf32>
    %24 = arith.mulf %23, %21 : vector<8x1xf32>
    %25 = vector.broadcast %1 : f32 to vector<8x1xf32>
    %26 = arith.mulf %21, %25 : vector<8x1xf32>
    %27 = vector.broadcast %26 : vector<8x1xf32> to vector<8x32xf32>
    %28 = arith.mulf %13, %27 : vector<8x32xf32>
    %29 = vector.broadcast %3 : f32 to vector<8x32xf32>
    %30 = arith.addf %28, %29 : vector<8x32xf32>
    %c0_8 = arith.constant 0 : index
    %c0_9 = arith.constant 0 : index
    %c0_10 = arith.constant 0 : index
    %31 = vector.load %arg4[%c0_8, %c0_9, %c0_10] : memref<1x32x16xf32, #tpu.memory_space<vmem>>, vector<1x32x16xf32>
    %32 = vector.shape_cast %31 : vector<1x32x16xf32> to vector<32x16xf32>
    %cst_11 = arith.constant dense<0.000000e+00> : vector<8x16xf32>
    %33 = tpu.matmul %30, %32, %cst_11 {dimension_numbers = #tpu.dot_dimension_numbers<[1], [0], [0], [1], [0, 0, 1, 1], [], []>} : vector<8x32xf32>, vector<32x16xf32>, vector<8x16xf32> -> vector<8x16xf32>
    %c0_12 = arith.constant 0 : index
    %c0_13 = arith.constant 0 : index
    %c0_14 = arith.constant 0 : index
    %34 = vector.load %arg5[%c0_12, %c0_13, %c0_14] : memref<1x1x16xf32, #tpu.memory_space<vmem>>, vector<1x1x16xf32>
    %35 = vector.shape_cast %34 : vector<1x1x16xf32> to vector<1x16xf32>
    %36 = vector.broadcast %35 : vector<1x16xf32> to vector<8x16xf32>
    %37 = arith.addf %33, %36 : vector<8x16xf32>
    %38 = vector.broadcast %3 : f32 to vector<8x16xf32>
    %39 = arith.subf %37, %38 : vector<8x16xf32>
    %40 = vector.broadcast %5 : f32 to vector<8x1xf32>
    %41 = arith.mulf %40, %24 : vector<8x1xf32>
    %42 = vector.broadcast %41 : vector<8x1xf32> to vector<8x16xf32>
    %43 = arith.mulf %39, %42 : vector<8x16xf32>
    %44 = vector.broadcast %11 : vector<8x1xf32> to vector<8x16xf32>
    %45 = arith.addf %43, %44 : vector<8x16xf32>
    %c0_15 = arith.constant 0 : index
    %c0_16 = arith.constant 0 : index
    %c0_17 = arith.constant 0 : index
    %46 = vector.load %arg6[%c0_15, %c0_16, %c0_17] : memref<1x8x16xf32, #tpu.memory_space<vmem>>, vector<1x8x16xf32>
    %47 = vector.shape_cast %46 : vector<1x8x16xf32> to vector<8x16xf32>
    %48 = vector.shape_cast %45 : vector<8x16xf32> to vector<1x8x16xf32>
    tpu.vector_store %arg6[%c0_15, %c0_16, %c0_17], %48 {strides = array<i32>} : memref<1x8x16xf32, #tpu.memory_space<vmem>>, vector<1x8x16xf32>,
    return
  }
  func.func @transform_0(%arg0: i32, %arg1: i32) -> (i32, i32) {
    %c0_i32 = arith.constant 0 : i32
    %c0_i32_0 = arith.constant 0 : i32
    %c0_i32_1 = arith.constant 0 : i32
    return %c0_i32, %c0_i32_0 : i32, i32
  }
  func.func @transform_1(%arg0: i32, %arg1: i32) -> (i32, i32, i32) {
    %c0_i32 = arith.constant 0 : i32
    %c0_i32_0 = arith.constant 0 : i32
    return %arg0, %arg1, %c0_i32 : i32, i32, i32
  }
  func.func @transform_2(%arg0: i32, %arg1: i32) -> (i32, i32, i32) {
    %c0_i32 = arith.constant 0 : i32
    %c0_i32_0 = arith.constant 0 : i32
    %c0_i32_1 = arith.constant 0 : i32
    return %arg0, %c0_i32, %c0_i32_0 : i32, i32, i32
  }
  func.func @transform_3(%arg0: i32, %arg1: i32) -> (i32, i32, i32) {
    %c0_i32 = arith.constant 0 : i32
    %c0_i32_0 = arith.constant 0 : i32
    %c0_i32_1 = arith.constant 0 : i32
    return %arg0, %c0_i32, %c0_i32_0 : i32, i32, i32
  }
  func.func @transform_4(%arg0: i32, %arg1: i32) -> (i32, i32, i32) {
    %c0_i32 = arith.constant 0 : i32
    %c0_i32_0 = arith.constant 0 : i32
    return %arg0, %arg1, %c0_i32 : i32, i32, i32
  }
}

</mosaic_0001>

<llo_original>
// kernel: rlinear_forward.1
$region0: #{rlinear_forward.1}
  #allocation0 [shape = 'u32[]', space=smem, size = 0x4, offset = 0x4, fixed_abs, tag = 'smem constant byte address 0x4 - core index']
  #allocation1 [shape = 'u32[144,128]{1,0:T(1,128)}', space=vmem, size = 0x12000, scoped, tag = 'internal scratch']
  %s0 = inlined_call_operand.vmem [shape: f32[3,4], index: 0, kind: input, shape index: {}]
  %s1 = inlined_call_operand.vmem [shape: f32[4,8,32], index: 1, kind: input, shape index: {}]
  %s2 = inlined_call_operand.vmem [shape: f32[4,32,16], index: 2, kind: input, shape index: {}]
  %s3 = inlined_call_operand.vmem [shape: f32[4,1,16], index: 3, kind: input, shape index: {}]
  %s4 = inlined_call_operand.vmem [shape: f32[4,8,16], index: 4, kind: output, shape index: {}]
  %s5 = sld [smem:[#allocation0]]
  $region53: #{rlinear_forward.1} parent=0
    _
  %s7 = ssub.s32 1, %s5
  %s8 = scalar_select 0, %s7, %s5
  $region1: #{rlinear_forward.1} parent=0
    #allocation2 [shape = 'u8[2048]{0}', space=smem, size = 0x800, scoped, tag = 'input window, operand 0, single buffered']
    #allocation3 [shape = 's32[2]{0}', space=sflag, size = 0x8, scoped, tag = 'scoped memory for rlinear_forward.1']
    %9 = vsyncpa [#allocation3], 0
    loop: start=0, step=1, limit=6
    $region2: #{rlinear_forward.1} parent=1 // loop_pre_header
      _
    $region3: #{rlinear_forward.1} parent=1 // loop_header
      %s11 = sphi 0, %s15
      %p12 = scmp.ge.s32.totalorder %s11, 6
      %s18 = sphi 0, %s30
      %s19 = sphi 0, %s26
      %s20 = sphi 0, %s18
      %s21 = sphi 0, %s19
      %s22 = sphi 0, %s20
      %s23 = sphi 0, %s21
      %s31 = sphi 0, %s31
      %s33 = sphi 0, %s31
      %s34 = sphi 0, %s33
      %s48 = sphi 0, %s34
      %s56 = sphi 0, %s58
      %s59 = sphi 0, %s56
      %s60 = sphi 0, %s59
      %s76 = sphi 0, %s60
      %s82 = sphi 0, %s84
      %s85 = sphi 0, %s82
      %s86 = sphi 0, %s85
      %s102 = sphi 0, %s86
      %s108 = sphi 0, %s110
      %s111 = sphi 0, %s108
      %s112 = sphi 0, %s111
      %s128 = sphi 0, %s112
      %s136 = sphi 0, %s138
      %s139 = sphi 0, %s136
      %s140 = sphi 0, %s139
      %s156 = sphi 0, %s140
    $region4: #{rlinear_forward.1} parent=1 // loop_header_branch
      %14 = sbr.rel (%p12) target = $region8
    $region5: #{rlinear_forward.1} parent=1 // loop_body
      %s16 = ssub.s32 %s11, 1
      %s17 = ssub.s32 %s11, 2
      %s24 = sadd.s32 1, %s19
      %p25 = scmp.ge.s32.totalorder %s24, 1
      %s26 = scalar_select %p25, 0, %s24
      %s27 = sadd.s32 1, %s18
      %s28 = scalar_select %p25, %s27, %s18
      %p29 = scmp.ge.s32.totalorder %s28, 4
      %s30 = scalar_select %p29, 0, %s28
      %s32 = sadd.s32 %s31, 1
      %p35 = scmp.eq.s32.totalorder %s11, 3
      %p36 = scmp.ne.s32.totalorder %s31, %s33
      %p37 = scmp.eq.s32.totalorder %s11, 0
      %p38 = por %p36, %p37
      %p39 = scmp.ne.s32.totalorder %s31, %s33
      %p40 = scmp.eq.s32.totalorder %s16, 3
      %p41 = por %p39, %p40
      %p42 = scmp.ne.s32.totalorder %s33, %s34
      %p43 = scmp.eq.s32.totalorder %s16, 0
      %p44 = por %p42, %p43
      %p45 = scmp.ne.s32.totalorder %s33, %s34
      %p46 = scmp.eq.s32.totalorder %s17, 3
      %p47 = por %p45, %p46
      %p49 = scmp.ne.s32.totalorder %s34, %s48
      %p50 = scmp.eq.s32.totalorder %s17, 0
      %p51 = por %p49, %p50
      %s52 = ssub.s32 %s18, %s30
      %s53 = ssub.s32 %s19, %s26
      %s54 = sor.u32 %s52, %s53
      %p55 = scmp.eq.s32.totalorder %s54, 0
      %s57 = sadd.s32 %s56, 1
      %s58 = scalar_select %p55, %s56, %s57
      %p61 = pneg %p55
      %p62 = scmp.eq.s32.totalorder %s11, 3
      %p63 = por %p61, %p62
      %p64 = scmp.ne.s32.totalorder %s56, %s59
      %p65 = scmp.eq.s32.totalorder %s11, 0
      %p66 = por %p64, %p65
      %p67 = scmp.ne.s32.totalorder %s56, %s59
      %p68 = scmp.eq.s32.totalorder %s16, 3
      %p69 = por %p67, %p68
      %p70 = scmp.ne.s32.totalorder %s59, %s60
      %p71 = scmp.eq.s32.totalorder %s16, 0
      %p72 = por %p70, %p71
      %p73 = scmp.ne.s32.totalorder %s59, %s60
      %p74 = scmp.eq.s32.totalorder %s17, 3
      %p75 = por %p73, %p74
      %p77 = scmp.ne.s32.totalorder %s60, %s76
      %p78 = scmp.eq.s32.totalorder %s17, 0
      %p79 = por %p77, %p78
      %s80 = ssub.s32 %s18, %s30
      %p81 = scmp.eq.s32.totalorder %s80, 0
      %s83 = sadd.s32 %s82, 1
      %s84 = scalar_select %p81, %s82, %s83
      %p87 = pneg %p81
      %p88 = scmp.eq.s32.totalorder %s11, 3
      %p89 = por %p87, %p88
      %p90 = scmp.ne.s32.totalorder %s82, %s85
      %p91 = scmp.eq.s32.totalorder %s11, 0
      %p92 = por %p90, %p91
      %p93 = scmp.ne.s32.totalorder %s82, %s85
      %p94 = scmp.eq.s32.totalorder %s16, 3
      %p95 = por %p93, %p94
      %p96 = scmp.ne.s32.totalorder %s85, %s86
      %p97 = scmp.eq.s32.totalorder %s16, 0
      %p98 = por %p96, %p97
      %p99 = scmp.ne.s32.totalorder %s85, %s86
      %p100 = scmp.eq.s32.totalorder %s17, 3
      %p101 = por %p99, %p100
      %p103 = scmp.ne.s32.totalorder %s86, %s102
      %p104 = scmp.eq.s32.totalorder %s17, 0
      %p105 = por %p103, %p104
      %s106 = ssub.s32 %s18, %s30
      %p107 = scmp.eq.s32.totalorder %s106, 0
      %s109 = sadd.s32 %s108, 1
      %s110 = scalar_select %p107, %s108, %s109
      %p113 = pneg %p107
      %p114 = scmp.eq.s32.totalorder %s11, 3
      %p115 = por %p113, %p114
      %p116 = scmp.ne.s32.totalorder %s108, %s111
      %p117 = scmp.eq.s32.totalorder %s11, 0
      %p118 = por %p116, %p117
      %p119 = scmp.ne.s32.totalorder %s108, %s111
      %p120 = scmp.eq.s32.totalorder %s16, 3
      %p121 = por %p119, %p120
      %p122 = scmp.ne.s32.totalorder %s111, %s112
      %p123 = scmp.eq.s32.totalorder %s16, 0
      %p124 = por %p122, %p123
      %p125 = scmp.ne.s32.totalorder %s111, %s112
      %p126 = scmp.eq.s32.totalorder %s17, 3
      %p127 = por %p125, %p126
      %p129 = scmp.ne.s32.totalorder %s112, %s128
      %p130 = scmp.eq.s32.totalorder %s17, 0
      %p131 = por %p129, %p130
      %s132 = ssub.s32 %s18, %s30
      %s133 = ssub.s32 %s19, %s26
      %s134 = sor.u32 %s132, %s133
      %p135 = scmp.eq.s32.totalorder %s134, 0
      %s137 = sadd.s32 %s136, 1
      %s138 = scalar_select %p135, %s136, %s137
      %p141 = pneg %p135
      %p142 = scmp.eq.s32.totalorder %s11, 3
      %p143 = por %p141, %p142
      %p144 = scmp.ne.s32.totalorder %s136, %s139
      %p145 = scmp.eq.s32.totalorder %s11, 0
      %p146 = por %p144, %p145
      %p147 = scmp.ne.s32.totalorder %s136, %s139
      %p148 = scmp.eq.s32.totalorder %s16, 3
      %p149 = por %p147, %p148
      %p150 = scmp.ne.s32.totalorder %s139, %s140
      %p151 = scmp.eq.s32.totalorder %s16, 0
      %p152 = por %p150, %p151
      %p153 = scmp.ne.s32.totalorder %s139, %s140
      %p154 = scmp.eq.s32.totalorder %s17, 3
      %p155 = por %p153, %p154
      %p157 = scmp.ne.s32.totalorder %s140, %s156
      %p158 = scmp.eq.s32.totalorder %s17, 0
      %p159 = por %p157, %p158
      %p160 = scmp.le.s32.totalorder 1, %s11
      %p161 = scmp.lt.s32.totalorder %s11, 5
      %p162 = pnand %p160, %p161
      %p163 = pneg %p162
      // Predicated region
      $region9: #{rlinear_forward.1} parent=5 // pred_check
        _
      $region10: #{rlinear_forward.1} parent=5 // pred_check_branch
        %165 = sbr.rel (%p162) target = $region12
      $region11: #{rlinear_forward.1} parent=5 // pred_region
        %s166 = ssub.s32 %s11, 1
        // Predicated region
        $region13: #{rlinear_forward.1} parent=11 // pred_check
          %p167 = pneg %p44
        $region14: #{rlinear_forward.1} parent=11 // pred_check_branch
          %169 = sbr.rel (%p167) target = $region16
        $region15: #{rlinear_forward.1} parent=11 // pred_region
          %s171 = ssub.s32 64, 64
          %172 = vsyncadd [#allocation3], %s171
          %s174 = sshll.u32 %s0, 4
          %s175 = int_to_ptr.vmem [resolvable:$true] %s174
          %177 = dma.vmem_to_smem %s175, 64, [#allocation2], [#allocation3]
        $region16: #{rlinear_forward.1} parent=11 // pred_fallthru
          _
      $region12: #{rlinear_forward.1} parent=5 // pred_fallthru
        _
      %p178 = scmp.lt.s32.totalorder %s11, 4
      // Predicated region
      $region17: #{rlinear_forward.1} parent=5 // pred_check
        %p179 = pneg %p178
      $region18: #{rlinear_forward.1} parent=5 // pred_check_branch
        %181 = sbr.rel (%p179) target = $region20
      $region19: #{rlinear_forward.1} parent=5 // pred_region
        // Predicated region
        $region21: #{rlinear_forward.1} parent=19 // pred_check
          %p182 = pneg %p66
        $region22: #{rlinear_forward.1} parent=19 // pred_check_branch
          %184 = sbr.rel (%p182) target = $region24
        $region23: #{rlinear_forward.1} parent=19 // pred_region
          %p185 = scmp.lt.s32.totalorder %s18, 3
          %s186 = scalar_select %p185, %s18, 3
          %p187 = scmp.lt.s32.totalorder %s19, 0
          %s188 = scalar_select %p187, %s19, 0
          %s189 = sadd.s32 %s188, %s186
          %s190 = smul.addr %s189, 8
          %s191 = scalar_lea.vmem %s1, %s190
        $region24: #{rlinear_forward.1} parent=19 // pred_fallthru
          _
        // Predicated region
        $region25: #{rlinear_forward.1} parent=19 // pred_check
          %p192 = pneg %p92
        $region26: #{rlinear_forward.1} parent=19 // pred_check_branch
          %194 = sbr.rel (%p192) target = $region28
        $region27: #{rlinear_forward.1} parent=19 // pred_region
          %p195 = scmp.lt.s32.totalorder %s18, 3
          %s196 = scalar_select %p195, %s18, 3
          %s197 = smul.addr %s196, 4
          %s198 = smul.addr %s197, 8
          %s199 = scalar_lea.vmem %s2, %s198
        $region28: #{rlinear_forward.1} parent=19 // pred_fallthru
          _
        // Predicated region
        $region29: #{rlinear_forward.1} parent=19 // pred_check
          %p200 = pneg %p118
        $region30: #{rlinear_forward.1} parent=19 // pred_check_branch
          %202 = sbr.rel (%p200) target = $region32
        $region31: #{rlinear_forward.1} parent=19 // pred_region
          %p203 = scmp.lt.s32.totalorder %s18, 3
          %s204 = scalar_select %p203, %s18, 3
          %s205 = scalar_lea.vmem %s3, %s204
        $region32: #{rlinear_forward.1} parent=19 // pred_fallthru
          _
      $region20: #{rlinear_forward.1} parent=5 // pred_fallthru
        _
      %p206 = scmp.le.s32.totalorder 1, %s11
      %p207 = scmp.lt.s32.totalorder %s11, 5
      %p208 = pnand %p206, %p207
      %p209 = pneg %p208
      // Predicated region
      $region33: #{rlinear_forward.1} parent=5 // pred_check
        _
      $region34: #{rlinear_forward.1} parent=5 // pred_check_branch
        %211 = sbr.rel (%p208) target = $region36
      $region35: #{rlinear_forward.1} parent=5 // pred_region
        %s212 = ssub.s32 %s11, 1
        // Predicated region
        $region37: #{rlinear_forward.1} parent=35 // pred_check
          %p213 = pneg %p44
        $region38: #{rlinear_forward.1} parent=35 // pred_check_branch
          %215 = sbr.rel (%p213) target = $region40
        $region39: #{rlinear_forward.1} parent=35 // pred_region
          %216 = dma.done [#allocation3], 64
        $region40: #{rlinear_forward.1} parent=35 // pred_fallthru
          _
        %217 = sfence
        %p218 = pneg %p44
        %p219 = pneg %p41
        %p220 = scmp.lt.s32.totalorder %s20, 3
        %s221 = scalar_select %p220, %s20, 3
        %p222 = scmp.lt.s32.totalorder %s21, 0
        %s223 = scalar_select %p222, %s21, 0
        %s224 = sadd.s32 %s223, %s221
        %s225 = smul.addr %s224, 8
        %s226 = scalar_lea.vmem %s1, %s225
        %p227 = pneg %p72
        %p228 = pneg %p69
        %p229 = scmp.lt.s32.totalorder %s20, 3
        %s230 = scalar_select %p229, %s20, 3
        %s231 = smul.addr %s230, 4
        %s232 = smul.addr %s231, 8
        %s233 = scalar_lea.vmem %s2, %s232
        %p234 = pneg %p98
        %p235 = pneg %p95
        %p236 = scmp.lt.s32.totalorder %s20, 3
        %s237 = scalar_select %p236, %s20, 3
        %s238 = scalar_lea.vmem %s3, %s237
        %p239 = pneg %p124
        %p240 = pneg %p121
        %p241 = pneg %p152
        %p242 = pneg %p149
        %p243 = scmp.lt.s32.totalorder %s20, 3
        %s244 = scalar_select %p243, %s20, 3
        %p245 = scmp.lt.s32.totalorder %s21, 0
        %s246 = scalar_select %p245, %s21, 0
        %s247 = sadd.s32 %s246, %s244
        %s248 = smul.addr %s247, 8
        %s249 = scalar_lea.vmem %s4, %s248
        %p250 = scmp.lt.s32.totalorder %s20, 3
        %s251 = scalar_select %p250, %s20, 3
        %p252 = scmp.lt.s32.totalorder %s21, 0
        %s253 = scalar_select %p252, %s21, 0
        %s254 = sadd.s32 %s253, %s251
        %s255 = smul.addr %s254, 8
        %s256 = scalar_lea.vmem %s1, %s255
        %p257 = scmp.lt.s32.totalorder %s20, 3
        %s258 = scalar_select %p257, %s20, 3
        %s259 = smul.addr %s258, 4
        %s260 = smul.addr %s259, 8
        %s261 = scalar_lea.vmem %s2, %s260
        %p262 = scmp.lt.s32.totalorder %s20, 3
        %s263 = scalar_select %p262, %s20, 3
        %s264 = scalar_lea.vmem %s3, %s263
        %p265 = scmp.lt.s32.totalorder %s20, 3
        %s266 = scalar_select %p265, %s20, 3
        %p267 = scmp.lt.s32.totalorder %s21, 0
        %s268 = scalar_select %p267, %s21, 0
        %s269 = sadd.s32 %s268, %s266
        %s270 = smul.addr %s269, 8
        %s271 = scalar_lea.vmem %s4, %s270
        %s272 = sld [smem:[#allocation2 + %s20]]
        %s273 = sshra.s32 %s20, 7
        %s274 = sand.u32 %s20, 127
        %s275 = sadd.s32 %s273, 1
        %s276 = smul.u32 %s275, 128
        %s277 = sshra.s32 %s20, 7
        %s278 = sand.u32 %s20, 127
        %s279 = sadd.s32 %s276, %s278
        %s280 = sld [smem:[#allocation2 + %s279]]
        %s281 = sadd.s32 %s273, 2
        %s282 = smul.u32 %s281, 128
        %s283 = sadd.s32 %s282, %s278
        %s284 = sld [smem:[#allocation2 + %s283]]
        %v285 = vld [vmem:[%s256] sm:$0xff]
        %vm286 = vcmask 261120
        %v287 = vsel %vm286, %v285, 0.0
        %288 = vadd.xlane.f32.xlu0 %v287
        %v289 = vpop.xlane.xlu0 %288
        %v290 = vmul.f32 %v289, 0.03125
        %v291 = vsub.f32 %v285, %v290
        %v292 = vmul.f32 %v291, %v291
        %v293 = vsel %vm286, %v292, 0.0
        %294 = vadd.xlane.f32.xlu0 %v293
        %v295 = vpop.xlane.xlu0 %294
        %v296 = vmul.f32 %v295, 0.03125
        %v297 = vadd.f32 %v296, 1e-05
        %v298 = vrsqrt.pop %v297
        %v299 = vmul.f32 %v297, %v298
        %v300 = vstv %s272
        %v301 = vmul.f32 %v298, %v300
        %v302 = vmul.f32 %v291, %v301
        %v303 = vstv %s280
        %v304 = vadd.f32 %v302, %v303
        %v305 = vld [vmem:[%s261] sm:$0xff]
        %v306 = vld [vmem:[%s261 + $0x8] sm:$0xff]
        %v307 = vld [vmem:[%s261 + $0x10] sm:$0xff]
        %v308 = vld [vmem:[%s261 + $0x18] sm:$0xff]
        %v309 = vld [vmem:[%s264] sm:$0x1]
        %v311 = vlaneseq
        %v312 = vshrl.u32 %v311, 7
        %v313 = vsub.s32 0, %v312
        %v314 = vrot.slane %v309, %v313
        %v317 = vsel %vm286, %v304, 0
        %319 = vmatprep.subr.mxu0 0.0
        %320 = vmatpush1.msra.mxu0 0.0
        %321 = vmatprep.subr.mxu0 0.0
        %322 = vmatpush1.msra.mxu0 0.0
        %323 = vmatprep.subr.mxu0 0.0
        %324 = vmatpush1.msra.mxu0 0.0
        %325 = vmatprep.subr.mxu0 0.0
        %326 = vmatpush1.msra.mxu0 0.0
        %327 = vmatprep.subr.mxu0 0.0
        %328 = vmatpush1.msra.mxu0 0.0
        %329 = vmatprep.subr.mxu0 0.0
        %330 = vmatpush1.msra.mxu0 0.0
        %331 = vmatprep.subr.mxu0 0.0
        %332 = vmatpush1.msra.mxu0 0.0
        %333 = vmatprep.subr.mxu0 0.0
        %334 = vmatpush1.msra.mxu0 0.0
        %335 = vmatprep.subr.mxu0 0.0
        %336 = vmatpush1.msra.mxu0 0.0
        %337 = vmatprep.subr.mxu0 0.0
        %338 = vmatpush1.msra.mxu0 0.0
        %339 = vmatprep.subr.mxu0 0.0
        %340 = vmatpush1.msra.mxu0 0.0
        %341 = vmatprep.subr.mxu0 0.0
        %342 = vmatpush1.msra.mxu0 0.0
        %343 = vmatprep.subr.mxu0 0.0
        %344 = vmatpush1.msra.mxu0 %v308
        %345 = vmatprep.subr.mxu0 0.0
        %346 = vmatpush1.msra.mxu0 %v307
        %347 = vmatprep.subr.mxu0 0.0
        %348 = vmatpush1.msra.mxu0 %v306
        %349 = vmatprep.subr.mxu0 0.0
        %350 = vmatpush1.msra.mxu0 %v305
        %351 = vmatprep.subr.mxu0 0.0
        %352 = vmatpush2.msra.mxu0 0.0
        %353 = vmatprep.subr.mxu0 0.0
        %354 = vmatpush2.msra.mxu0 0.0
        %355 = vmatprep.subr.mxu0 0.0
        %356 = vmatpush2.msra.mxu0 0.0
        %357 = vmatprep.subr.mxu0 0.0
        %358 = vmatpush2.msra.mxu0 0.0
        %359 = vmatprep.subr.mxu0 0.0
        %360 = vmatpush2.msra.mxu0 0.0
        %361 = vmatprep.subr.mxu0 0.0
        %362 = vmatpush2.msra.mxu0 0.0
        %363 = vmatprep.subr.mxu0 0.0
        %364 = vmatpush2.msra.mxu0 0.0
        %365 = vmatprep.subr.mxu0 0.0
        %366 = vmatpush2.msra.mxu0 0.0
        %367 = vmatprep.subr.mxu0 0.0
        %368 = vmatpush2.msra.mxu0 0.0
        %369 = vmatprep.subr.mxu0 0.0
        %370 = vmatpush2.msra.mxu0 0.0
        %371 = vmatprep.subr.mxu0 0.0
        %372 = vmatpush2.msra.mxu0 0.0
        %373 = vmatprep.subr.mxu0 0.0
        %374 = vmatpush2.msra.mxu0 0.0
        %375 = vmatprep.subr.mxu0 0.0
        %376 = vmatpush2.msra.mxu0 0.0
        %377 = vmatprep.subr.mxu0 0.0
        %378 = vmatpush2.msra.mxu0 0.0
        %379 = vmatprep.subr.mxu0 0.0
        %380 = vmatpush2.msra.mxu0 0.0
        %381 = vmatprep.subr.mxu0 0.0
        %382 = vmatpush2.msra.mxu0 0.0
        %383 = vmatprep.mubr.f32.mxu0 0.0
        %384 = vmatmul.mubr.f32.gmra.mxu0 %v317
        %v385 = vpop.f32.mrf.mxu0
        %v386 = vadd.f32 %v314, %v385
        %v387 = vpop.f32.mrf.mxu0
        %388 = vdwg.mxu0
        %v389 = vsub.f32 %v386, %v303
        %v390 = vstv %s284
        %v391 = vmul.f32 %v390, %v299
        %v392 = vmul.f32 %v389, %v391
        %v393 = vadd.f32 %v392, %v290
        %vm394 = vcmask 130048
        %395 = vst.msk [vmem:[%s271] sm:$0xff] %vm394, %v393
        %p396 = scmp.lt.s32.totalorder %s20, 3
        %s397 = scalar_select %p396, %s20, 3
        %p398 = scmp.lt.s32.totalorder %s21, 0
        %s399 = scalar_select %p398, %s21, 0
        %s400 = sadd.s32 %s399, %s397
        %s401 = smul.addr %s400, 8
        %s402 = scalar_lea.vmem %s4, %s401
        // Predicated region
        $region41: #{rlinear_forward.1} parent=35 // pred_check
          %p403 = pneg %p149
        $region42: #{rlinear_forward.1} parent=35 // pred_check_branch
          %405 = sbr.rel (%p403) target = $region44
        $region43: #{rlinear_forward.1} parent=35 // pred_region
          _
        $region44: #{rlinear_forward.1} parent=35 // pred_fallthru
          _
      $region36: #{rlinear_forward.1} parent=5 // pred_fallthru
        _
      %p406 = scmp.le.s32.totalorder 2, %s11
      // Predicated region
      $region45: #{rlinear_forward.1} parent=5 // pred_check
        %p407 = pneg %p406
      $region46: #{rlinear_forward.1} parent=5 // pred_check_branch
        %409 = sbr.rel (%p407) target = $region48
      $region47: #{rlinear_forward.1} parent=5 // pred_region
        %s410 = ssub.s32 %s11, 2
        // Predicated region
        $region49: #{rlinear_forward.1} parent=47 // pred_check
          %p411 = pneg %p155
        $region50: #{rlinear_forward.1} parent=47 // pred_check_branch
          %413 = sbr.rel (%p411) target = $region52
        $region51: #{rlinear_forward.1} parent=47 // pred_region
          %p414 = scmp.lt.s32.totalorder %s22, 3
          %s415 = scalar_select %p414, %s22, 3
          %p416 = scmp.lt.s32.totalorder %s23, 0
          %s417 = scalar_select %p416, %s23, 0
          %s418 = sadd.s32 %s417, %s415
          %s419 = smul.addr %s418, 8
          %s420 = scalar_lea.vmem %s4, %s419
        $region52: #{rlinear_forward.1} parent=47 // pred_fallthru
          _
      $region48: #{rlinear_forward.1} parent=5 // pred_fallthru
        _
    $region6: #{rlinear_forward.1} parent=1 // loop_footer
      %s15 = sadd.s32 1, %s11
    $region7: #{rlinear_forward.1} parent=1 // loop_footer_branch
      %10 = sbr.rel target = $region3
    $region8: #{rlinear_forward.1} parent=1 // loop_exit
      _
    %421 = vsyncpa [#allocation3], 1
    %s422 = scalar_lea.sflag [#allocation3], 1
    %423 = vsyncpa %s422, 1

</llo_original>
